<compile_context>
chip_gen: v7x
topology: tpu7x:2x2x1
jax: 0.10.0
libtpu: 0.0.40
codegen_flags: <defaults>
</compile_context>

<pallas_src>
import math
import functools

import jax
import jax.numpy as jnp
from jax import lax
from jax.experimental import pallas as pl
from jax.experimental.pallas import tpu as pltpu


def _gelu_exact(x):
    # nn.GELU() default = exact erf formulation (f32 math; keeps v5e VPU happy).
    return 0.5 * x * (1.0 + lax.erf(x / math.sqrt(2.0)))


def _round_up(a, m):
    return ((a + m - 1) // m) * m


def iqa_head_kernel(x_ref, w1_ref, b1_ref, w2_ref, b2_ref, o_ref):
    # x_ref : (tm, C)   row tile of the flattened input (native dtype)
    # w1_ref: (C, H)    fc_hid weight, pre-transposed, same dtype as x
    # b1_ref: (1, H)    fc_hid bias (f32, VMEM)
    # w2_ref: (1, H)    fc_last weight row (f32, VMEM)
    # b2_ref: (1, 1)    fc_last bias (f32, SMEM scalar)
    # o_ref : (tm, 1)
    # fc_hid on the MXU, f32 accumulation (dropout before fc_hid = identity in eval).
    h = jnp.dot(x_ref[...], w1_ref[...], preferred_element_type=jnp.float32)
    h = _gelu_exact(h + b1_ref[...].astype(jnp.float32))
    # fc_last: width-1 output -> VPU multiply + XLU lane reduction (no MXU drain).
    out = jnp.sum(h * w2_ref[...].astype(jnp.float32), axis=-1, keepdims=True)
    out = out + b2_ref[0, 0].astype(jnp.float32)
    o_ref[...] = out.astype(o_ref.dtype)


@functools.partial(jax.jit, static_argnames=("tm",))
def iqa_head(x, w1_t, b1, w2, b2, *, tm=512):
    """x: (..., in_channels) -> (..., 1).

    w1_t: (in_channels, hidden)  -- fc_hid weight, pre-transposed
    b1  : (hidden,)
    w2  : (1, hidden)            -- fc_last weight (PyTorch layout, used as a row)
    b2  : (1,)
    """
    lead = x.shape[:-1]
    in_ch = x.shape[-1]
    hid = w1_t.shape[-1]
    n = math.prod(lead) if lead else 1
    x2 = x.reshape(n, in_ch)

    # Keep the big matmul on the native (e.g. bf16) MXU path.
    w1c = w1_t.astype(x.dtype)
    b1_2 = b1.reshape(1, hid).astype(jnp.float32)
    w2_2 = w2.reshape(1, hid).astype(jnp.float32)
    b2_2 = b2.reshape(1, 1).astype(jnp.float32)

    # Big row tiles; shrink for tiny N (Pallas handles the ragged last tile).
    tm_eff = min(tm, _round_up(n, 8))
    grid = (pl.cdiv(n, tm_eff),)

    itemsize = x2.dtype.itemsize
    cost = pl.CostEstimate(
        flops=2 * n * in_ch * hid + 4 * n * hid,
        transcendentals=n * hid,
        bytes_accessed=(n * in_ch * itemsize            # x stream
                        + n * itemsize                  # output
                        + in_ch * hid * itemsize        # W1
                        + (2 * hid + 1) * 4),           # b1, w2, b2
    )

    out2 = pl.pallas_call(
        iqa_head_kernel,
        out_shape=jax.ShapeDtypeStruct((n, 1), x.dtype),
        grid=grid,
        in_specs=[
            pl.BlockSpec((tm_eff, in_ch), lambda i: (i, 0)),   # x row tile
            pl.BlockSpec((in_ch, hid), lambda i: (0, 0)),      # W1^T (resident)
            pl.BlockSpec((1, hid), lambda i: (0, 0)),          # b1
            pl.BlockSpec((1, hid), lambda i: (0, 0)),          # w2 row
            pl.BlockSpec(memory_space=pltpu.MemorySpace.SMEM), # b2 scalar
        ],
        out_specs=pl.BlockSpec((tm_eff, 1), lambda i: (i, 0)),
        compiler_params=pltpu.CompilerParams(
            dimension_semantics=("parallel",)),
        cost_estimate=cost,
    )(x2, w1c, b1_2, w2_2, b2_2)

    return out2.reshape(*lead, 1)


def init_params(key, in_channels, hidden_channels, dtype=jnp.float32):
    """Deterministic init matching nn.Linear defaults
    (uniform(-1/sqrt(fan_in), 1/sqrt(fan_in)) for weight and bias)."""
    k1, k2, k3, k4 = jax.random.split(key, 4)
    bound1 = 1.0 / math.sqrt(in_channels)
    w1 = jax.random.uniform(k1, (hidden_channels, in_channels), dtype,
                            minval=-bound1, maxval=bound1)
    b1 = jax.random.uniform(k2, (hidden_channels,), dtype,
                            minval=-bound1, maxval=bound1)
    bound2 = 1.0 / math.sqrt(hidden_channels)
    w2 = jax.random.uniform(k3, (1, hidden_channels), dtype,
                            minval=-bound2, maxval=bound2)
    b2 = jax.random.uniform(k4, (1,), dtype, minval=-bound2, maxval=bound2)
    return w1, b1, w2, b2


def _reference(x, w1, b1, w2, b2):
    h = _gelu_exact(x @ w1.T + b1)
    return h @ w2.T + b2


if __name__ == "__main__":
    # Small shapes consistent with the module's forward:
    #   x: (batch, seq, in_channels) = (2, 8, 128), hidden = 64
    batch, seq, in_ch, hid = 2, 8, 128, 64
    key = jax.random.PRNGKey(0)
    kx, kb, kp = jax.random.split(key, 3)

    w1, b1, w2, b2 = init_params(kp, in_ch, hid)

    # --- small case (single tile) ---
    x = jax.random.normal(kx, (batch, seq, in_ch), dtype=jnp.float32)
    out = iqa_head(x, w1.T, b1, w2, b2)
    out = jax.block_until_ready(out)
    ref = _reference(x, w1, b1, w2, b2)
    assert out.shape == (batch, seq, 1), out.shape
    assert jnp.allclose(out, ref, atol=1e-4, rtol=1e-4), (
        float(jnp.max(jnp.abs(out - ref))))

    # --- larger case: multi-tile grid + ragged last tile (N = 2100, tm = 512) ---
    xb = jax.random.normal(kb, (3, 700, in_ch), dtype=jnp.float32)
    outb = jax.block_until_ready(iqa_head(xb, w1.T, b1, w2, b2))
    refb = _reference(xb, w1, b1, w2, b2)
    assert outb.shape == (3, 700, 1), outb.shape
    assert jnp.allclose(outb, refb, atol=1e-4, rtol=1e-4), (
        float(jnp.max(jnp.abs(outb - refb))))

    print("KERNEL_OK")
</pallas_src>

<mosaic_0001>
module attributes {stable_mosaic.version = 11 : i64} {
  func.func @iqa_head_kernel(%arg0: i32, %arg1: memref<16x128xf32, #tpu.memory_space<vmem>>, %arg2: memref<128x64xf32, #tpu.memory_space<vmem>>, %arg3: memref<1x64xf32, #tpu.memory_space<vmem>>, %arg4: memref<1x64xf32, #tpu.memory_space<vmem>>, %arg5: memref<1x1xf32, #tpu.memory_space<smem>>, %arg6: memref<16x1xf32, #tpu.memory_space<vmem>>) attributes {dimension_semantics = [#tpu.dimension_semantics<parallel>], iteration_bounds = array<i64: 1>, scalar_prefetch = 0 : i64, scratch_operands = 0 : i64, tpu.core_type = #tpu.core_type<tc>, window_params = [{transform_indices = @transform_0, window_bounds = array<i64: 16, 128>}, {pipeline_mode = #tpu.pipeline_mode<synchronous>, transform_indices = @transform_1, window_bounds = array<i64: 128, 64>}, {pipeline_mode = #tpu.pipeline_mode<synchronous>, transform_indices = @transform_2, window_bounds = array<i64: 1, 64>}, {pipeline_mode = #tpu.pipeline_mode<synchronous>, transform_indices = @transform_3, window_bounds = array<i64: 1, 64>}, {transform_indices = @transform_4, window_bounds = array<i64: 1, 1>}, {transform_indices = @transform_5, window_bounds = array<i64: 16, 1>}]} {
    %c0 = arith.constant 0 : index
    %c0_0 = arith.constant 0 : index
    %0 = vector.load %arg1[%c0, %c0_0] : memref<16x128xf32, #tpu.memory_space<vmem>>, vector<16x128xf32>
    %c0_1 = arith.constant 0 : index
    %c0_2 = arith.constant 0 : index
    %1 = vector.load %arg2[%c0_1, %c0_2] : memref<128x64xf32, #tpu.memory_space<vmem>>, vector<128x64xf32>
    %cst = arith.constant dense<0.000000e+00> : vector<16x64xf32>
    %2 = tpu.matmul %0, %1, %cst {dimension_numbers = #tpu.dot_dimension_numbers<[1], [0], [0], [1], [0, 0, 1, 1], [], []>} : vector<16x128xf32>, vector<128x64xf32>, vector<16x64xf32> -> vector<16x64xf32>
    %c0_3 = arith.constant 0 : index
    %c0_4 = arith.constant 0 : index
    %3 = vector.load %arg3[%c0_3, %c0_4] : memref<1x64xf32, #tpu.memory_space<vmem>>, vector<1x64xf32>
    %4 = vector.broadcast %3 : vector<1x64xf32> to vector<16x64xf32>
    %5 = arith.addf %2, %4 : vector<16x64xf32>
    %cst_5 = arith.constant 5.000000e-01 : f32
    %6 = vector.broadcast %cst_5 : f32 to vector<16x64xf32>
    %7 = arith.mulf %6, %5 : vector<16x64xf32>
    %cst_6 = arith.constant 1.41421354 : f32
    %8 = vector.broadcast %cst_6 : f32 to vector<16x64xf32>
    %9 = arith.divf %5, %8 : vector<16x64xf32>
    %10 = math.erf %9 : vector<16x64xf32>
    %cst_7 = arith.constant 1.000000e+00 : f32
    %11 = vector.broadcast %cst_7 : f32 to vector<16x64xf32>
    %12 = arith.addf %11, %10 : vector<16x64xf32>
    %13 = arith.mulf %7, %12 : vector<16x64xf32>
    %c0_8 = arith.constant 0 : index
    %c0_9 = arith.constant 0 : index
    %14 = vector.load %arg4[%c0_8, %c0_9] : memref<1x64xf32, #tpu.memory_space<vmem>>, vector<1x64xf32>
    %15 = vector.broadcast %14 : vector<1x64xf32> to vector<16x64xf32>
    %16 = arith.mulf %13, %15 : vector<16x64xf32>
    %cst_10 = arith.constant dense<0.000000e+00> : vector<16xf32>
    %17 = vector.multi_reduction <add>, %16, %cst_10 [1] : vector<16x64xf32> to vector<16xf32>
    %18 = vector.shape_cast %17 : vector<16xf32> to vector<16x1xf32>
    %c0_11 = arith.constant 0 : index
    %c0_12 = arith.constant 0 : index
    %19 = memref.load %arg5[%c0_11, %c0_12] : memref<1x1xf32, #tpu.memory_space<smem>>
    %20 = vector.broadcast %19 : f32 to vector<16x1xf32>
    %21 = arith.addf %18, %20 : vector<16x1xf32>
    %c0_13 = arith.constant 0 : index
    %c0_14 = arith.constant 0 : index
    %22 = vector.load %arg6[%c0_13, %c0_14] : memref<16x1xf32, #tpu.memory_space<vmem>>, vector<16x1xf32>
    tpu.vector_store %arg6[%c0_13, %c0_14], %21 {strides = array<i32>} : memref<16x1xf32, #tpu.memory_space<vmem>>, vector<16x1xf32>,
    return
  }
  func.func @transform_0(%arg0: i32) -> (i32, i32) {
    %c0_i32 = arith.constant 0 : i32
    %c0_i32_0 = arith.constant 0 : i32
    return %arg0, %c0_i32 : i32, i32
  }
  func.func @transform_1(%arg0: i32) -> (i32, i32) {
    %c0_i32 = arith.constant 0 : i32
    %c0_i32_0 = arith.constant 0 : i32
    %c0_i32_1 = arith.constant 0 : i32
    return %c0_i32, %c0_i32_0 : i32, i32
  }
  func.func @transform_2(%arg0: i32) -> (i32, i32) {
    %c0_i32 = arith.constant 0 : i32
    %c0_i32_0 = arith.constant 0 : i32
    %c0_i32_1 = arith.constant 0 : i32
    return %c0_i32, %c0_i32_0 : i32, i32
  }
  func.func @transform_3(%arg0: i32) -> (i32, i32) {
    %c0_i32 = arith.constant 0 : i32
    %c0_i32_0 = arith.constant 0 : i32
    %c0_i32_1 = arith.constant 0 : i32
    return %c0_i32, %c0_i32_0 : i32, i32
  }
  func.func @transform_4(%arg0: i32) -> (i32, i32) {
    %c0_i32 = arith.constant 0 : i32
    %c0_i32_0 = arith.constant 0 : i32
    %c0_i32_1 = arith.constant 0 : i32
    return %c0_i32, %c0_i32_0 : i32, i32
  }
  func.func @transform_5(%arg0: i32) -> (i32, i32) {
    %c0_i32 = arith.constant 0 : i32
    %c0_i32_0 = arith.constant 0 : i32
    return %arg0, %c0_i32 : i32, i32
  }
}

</mosaic_0001>

<llo_original>
// kernel: iqa_head.1
$region0: #{iqa_head.1}
  #allocation0 [shape = 'u32[]', space=smem, size = 0x4, offset = 0x4, fixed_abs, tag = 'smem constant byte address 0x4 - core index']
  #allocation1 [shape = 'u32[144,128]{1,0:T(1,128)}', space=vmem, size = 0x12000, scoped, tag = 'internal scratch']
  #allocation2 [shape = 'f32[1,1]{1,0:T(1,128)S(6)}', space=smem, size = 0x200, scoped, tag = 'scoped memory for iqa_head.1']
  %s0 = inlined_call_operand.vmem [shape: f32[16,128], index: 0, kind: input, shape index: {}]
  %s1 = inlined_call_operand.vmem [shape: f32[128,64], index: 1, kind: input, shape index: {}]
  %s2 = inlined_call_operand.vmem [shape: f32[1,64], index: 2, kind: input, shape index: {}]
  %s3 = inlined_call_operand.vmem [shape: f32[1,64], index: 3, kind: input, shape index: {}]
  %s4 = inlined_call_operand.<no memory space> [shape: f32[1,1], index: 4, kind: input, shape index: {}]
  %s5 = inlined_call_operand.vmem [shape: f32[16,1], index: 5, kind: output, shape index: {}]
  %s6 = sld [smem:[#allocation0]]
  $region30: #{iqa_head.1} parent=0
    _
  %s8 = ssub.s32 1, %s6
  %s9 = scalar_select 0, %s8, %s6
  %10 = sst [smem:[#allocation2]] %s4
  // Predicated region
  $region2: #{iqa_head.1} parent=0 // pred_check
    _
  $region3: #{iqa_head.1} parent=0 // pred_check_branch
    %12 = sbr.rel (0) target = $region5
  $region4: #{iqa_head.1} parent=0 // pred_region
    _
  $region5: #{iqa_head.1} parent=0 // pred_fallthru
    _
  // Predicated region
  $region6: #{iqa_head.1} parent=0 // pred_check
    _
  $region7: #{iqa_head.1} parent=0 // pred_check_branch
    %14 = sbr.rel (0) target = $region9
  $region8: #{iqa_head.1} parent=0 // pred_region
    _
  $region9: #{iqa_head.1} parent=0 // pred_fallthru
    _
  // Predicated region
  $region10: #{iqa_head.1} parent=0 // pred_check
    _
  $region11: #{iqa_head.1} parent=0 // pred_check_branch
    %16 = sbr.rel (0) target = $region13
  $region12: #{iqa_head.1} parent=0 // pred_region
    _
  $region13: #{iqa_head.1} parent=0 // pred_fallthru
    _
  // Predicated region
  $region14: #{iqa_head.1} parent=0 // pred_check
    _
  $region15: #{iqa_head.1} parent=0 // pred_check_branch
    %18 = sbr.rel (0) target = $region17
  $region16: #{iqa_head.1} parent=0 // pred_region
    _
  $region17: #{iqa_head.1} parent=0 // pred_fallthru
    _
  // Predicated region
  $region18: #{iqa_head.1} parent=0 // pred_check
    _
  $region19: #{iqa_head.1} parent=0 // pred_check_branch
    %20 = sbr.rel (0) target = $region21
  $region20: #{iqa_head.1} parent=0 // pred_region
    _
  $region21: #{iqa_head.1} parent=0 // pred_fallthru
    _
  %v21 = vld [vmem:[%s0] sm:$0xff]
  %v22 = vld [vmem:[%s0 + $0x8] sm:$0xff]
  %v23 = vld [vmem:[%s1] sm:$0xff]
  %v24 = vld [vmem:[%s1 + $0x8] sm:$0xff]
  %v25 = vld [vmem:[%s1 + $0x10] sm:$0xff]
  %v26 = vld [vmem:[%s1 + $0x18] sm:$0xff]
  %v27 = vld [vmem:[%s1 + $0x20] sm:$0xff]
  %v28 = vld [vmem:[%s1 + $0x28] sm:$0xff]
  %v29 = vld [vmem:[%s1 + $0x30] sm:$0xff]
  %v30 = vld [vmem:[%s1 + $0x38] sm:$0xff]
  %v31 = vld [vmem:[%s1 + $0x40] sm:$0xff]
  %v32 = vld [vmem:[%s1 + $0x48] sm:$0xff]
  %v33 = vld [vmem:[%s1 + $0x50] sm:$0xff]
  %v34 = vld [vmem:[%s1 + $0x58] sm:$0xff]
  %v35 = vld [vmem:[%s1 + $0x60] sm:$0xff]
  %v36 = vld [vmem:[%s1 + $0x68] sm:$0xff]
  %v37 = vld [vmem:[%s1 + $0x70] sm:$0xff]
  %v38 = vld [vmem:[%s1 + $0x78] sm:$0xff]
  %v39 = vld [vmem:[%s2] sm:$0x1]
  %v41 = vlaneseq
  %v42 = vshrl.u32 %v41, 7
  %v43 = vsub.s32 0, %v42
  %v44 = vrot.slane %v39, %v43
  %46 = vmatprep.subr.mxu0 0.0
  %47 = vmatpush1.msra.mxu0 %v23
  %48 = vmatprep.subr.mxu0 0.0
  %49 = vmatpush1.msra.mxu0 %v24
  %50 = vmatprep.subr.mxu0 0.0
  %51 = vmatpush1.msra.mxu0 %v25
  %52 = vmatprep.subr.mxu0 0.0
  %53 = vmatpush1.msra.mxu0 %v26
  %54 = vmatprep.subr.mxu0 0.0
  %55 = vmatpush1.msra.mxu0 %v27
  %56 = vmatprep.subr.mxu0 0.0
  %57 = vmatpush1.msra.mxu0 %v28
  %58 = vmatprep.subr.mxu0 0.0
  %59 = vmatpush1.msra.mxu0 %v29
  %60 = vmatprep.subr.mxu0 0.0
  %61 = vmatpush1.msra.mxu0 %v30
  %62 = vmatprep.subr.mxu0 0.0
  %63 = vmatpush1.msra.mxu0 %v31
  %64 = vmatprep.subr.mxu0 0.0
  %65 = vmatpush1.msra.mxu0 %v32
  %66 = vmatprep.subr.mxu0 0.0
  %67 = vmatpush1.msra.mxu0 %v33
  %68 = vmatprep.subr.mxu0 0.0
  %69 = vmatpush1.msra.mxu0 %v34
  %70 = vmatprep.subr.mxu0 0.0
  %71 = vmatpush1.msra.mxu0 %v35
  %72 = vmatprep.subr.mxu0 0.0
  %73 = vmatpush1.msra.mxu0 %v36
  %74 = vmatprep.subr.mxu0 0.0
  %75 = vmatpush1.msra.mxu0 %v37
  %76 = vmatprep.subr.mxu0 0.0
  %77 = vmatpush1.msra.mxu0 %v38
  %78 = vmatprep.subr.mxu0 0.0
  %79 = vmatpush1.msra.mxu0 0.0
  %80 = vmatprep.subr.mxu0 0.0
  %81 = vmatpush1.msra.mxu0 0.0
  %82 = vmatprep.subr.mxu0 0.0
  %83 = vmatpush1.msra.mxu0 0.0
  %84 = vmatprep.subr.mxu0 0.0
  %85 = vmatpush1.msra.mxu0 0.0
  %86 = vmatprep.subr.mxu0 0.0
  %87 = vmatpush1.msra.mxu0 0.0
  %88 = vmatprep.subr.mxu0 0.0
  %89 = vmatpush1.msra.mxu0 0.0
  %90 = vmatprep.subr.mxu0 0.0
  %91 = vmatpush1.msra.mxu0 0.0
  %92 = vmatprep.subr.mxu0 0.0
  %93 = vmatpush1.msra.mxu0 0.0
  %94 = vmatprep.subr.mxu0 0.0
  %95 = vmatpush1.msra.mxu0 0.0
  %96 = vmatprep.subr.mxu0 0.0
  %97 = vmatpush1.msra.mxu0 0.0
  %98 = vmatprep.subr.mxu0 0.0
  %99 = vmatpush1.msra.mxu0 0.0
  %100 = vmatprep.subr.mxu0 0.0
  %101 = vmatpush1.msra.mxu0 0.0
  %102 = vmatprep.subr.mxu0 0.0
  %103 = vmatpush1.msra.mxu0 0.0
  %104 = vmatprep.subr.mxu0 0.0
  %105 = vmatpush1.msra.mxu0 0.0
  %106 = vmatprep.subr.mxu0 0.0
  %107 = vmatpush1.msra.mxu0 0.0
  %108 = vmatprep.subr.mxu0 0.0
  %109 = vmatpush1.msra.mxu0 0.0
  %110 = vmatprep.mubr.f32.mxu0 0.0
  %111 = vmatmul.mubr.f32.gmra.mrb[0].mxu0 %v21
  %v112 = vpop.f32.mrb[0].mxu0
  %v113 = vadd.f32 %v44, %v112
  %v114 = vpop.f32.mrb[0].mxu0
  %115 = vmatprep.mubr.f32.mxu0 0.0
  %116 = vmatmul.mubr.f32.gmra.mrb[0].mxu0 %v22
  %v117 = vpop.f32.mrb[0].mxu0
  %v118 = vadd.f32 %v44, %v117
  %v119 = vpop.f32.mrb[0].mxu0
  %120 = vdwg.mxu0
  %v121 = vmul.f32 %v113, 0.5
  %v122 = vmul.f32 %v118, 0.5
  %v123 = vrcp.pop 1.4142135
  %v124 = vmul.f32 %v113, %v123
  %v125 = vmul.f32 %v118, %v123
  %v126 = verf.f32.pop %v124
  %v127 = verf.f32.pop %v125
  %v128 = vadd.f32 %v126, 1.0
  %v129 = vadd.f32 %v127, 1.0
  %v130 = vmul.f32 %v121, %v128
  %v131 = vmul.f32 %v122, %v129
  %v132 = vld [vmem:[%s3] sm:$0x1]
  %v134 = vlaneseq
  %v135 = vshrl.u32 %v134, 7
  %v136 = vsub.s32 0, %v135
  %v137 = vrot.slane %v132, %v136
  %v139 = vmul.f32 %v130, %v137
  %v140 = vmul.f32 %v131, %v137
  %vm141 = vcmask 523264
  %v142 = vsel %vm141, %v139, 0.0
  %143 = vadd.xlane.f32.xlu0 %v142
  %v144 = vpop.xlane.xlu0 %143
  %v145 = vsel %vm141, %v140, 0.0
  %146 = vadd.xlane.f32.xlu0 %v145
  %v147 = vpop.xlane.xlu0 %146
  %s148 = sld [smem:[#allocation2]]
  %v149 = vstv %s148
  %v150 = vadd.f32 %v144, %v149
  %v151 = vadd.f32 %v147, %v149
  %vm152 = vcmask 7168
  %153 = vst.msk [vmem:[%s5] sm:$0xff] %vm152, %v150
  %154 = vst.msk [vmem:[%s5 + $0x8] sm:$0xff] %vm152, %v151
  // Predicated region
  $region22: #{iqa_head.1} parent=0 // pred_check
    _
  $region23: #{iqa_head.1} parent=0 // pred_check_branch
    %156 = sbr.rel (0) target = $region25
  $region24: #{iqa_head.1} parent=0 // pred_region
    _
  $region25: #{iqa_head.1} parent=0 // pred_fallthru
    _
  // Predicated region
  $region26: #{iqa_head.1} parent=0 // pred_check
    _
  $region27: #{iqa_head.1} parent=0 // pred_check_branch
    %158 = sbr.rel (0) target = $region29
  $region28: #{iqa_head.1} parent=0 // pred_region
    _
  $region29: #{iqa_head.1} parent=0 // pred_fallthru
    _

</llo_original>
